<compile_context>
chip_gen: v5e
topology: v5e:2x2
jax: 0.10.0
libtpu: 0.0.40
codegen_flags: <defaults>
</compile_context>

<pallas_src>
import functools

import jax
import jax.numpy as jnp
from jax.experimental import pallas as pl
from jax.experimental.pallas import tpu as pltpu

LIMIT = 1.0
_MIB = 1 << 20


def _round_up(x, m):
    return (x + m - 1) // m * m


def _sublane_multiple(dtype):
    # f32 -> 8 sublanes per vreg, bf16 -> 16 (packed pairs), int8 -> 32.
    return {4: 8, 2: 16, 1: 32}.get(jnp.dtype(dtype).itemsize, 8)


# ---------------------------------------------------------------------------
# Path 1: VMEM-resident table, one-hot MXU gather.
# ---------------------------------------------------------------------------
def _vmem_table_kernel(ids_ref, scale_ref, w_ref, out_ref, *, limit):
    """out = clamp(one_hot(ids) @ W, -limit, limit) * scale for one tile."""
    tile = ids_ref.shape[0]
    vocab = w_ref.shape[0]
    # one_hot[t, v] = (ids[t] == v); exact 0/1 selection, so clamping after the
    # matmul is identical to clamping the table first.
    col = jax.lax.broadcasted_iota(jnp.int32, (tile, vocab), 1)
    one_hot = (ids_ref[...] == col).astype(w_ref.dtype)          # (tile, vocab)
    rows = jnp.dot(one_hot, w_ref[...],
                   preferred_element_type=jnp.float32)           # (tile, D) f32
    out_ref[...] = (jnp.clip(rows, -limit, limit) * scale_ref[0]).astype(
        out_ref.dtype)


# ---------------------------------------------------------------------------
# Path 2: HBM-resident table, per-row DMA gather, cross-step double buffering.
# ---------------------------------------------------------------------------
def _hbm_gather_kernel(ids_ref, scale_ref, w_hbm_ref, out_ref,
                       row_buf, sems, *, tile, limit):
    i = pl.program_id(0)
    n_steps = pl.num_programs(0)
    slot = i & 1

    def issue(step, slot_):
        base = step * tile
        # Static unroll: tile per-row DMAs, all in flight simultaneously.
        # Ids are read from SMEM here, i.e. before any .wait() below.
        for t in range(tile):
            idx = ids_ref[base + t]
            pltpu.make_async_copy(
                w_hbm_ref.at[idx],            # (D,) row in HBM
                row_buf.at[slot_, t],         # (D,) row in VMEM slot
                sems.at[slot_, t]).start()

    # Prime slot 0 on the very first step.
    @pl.when(i == 0)
    def _():
        issue(0, 0)

    # Prefetch the NEXT tile's rows into the other slot before waiting, so the
    # gather for step i+1 overlaps this step's compute + output writeback.
    @pl.when(i + 1 < n_steps)
    def _():
        issue(i + 1, 1 - slot)

    # Wait for this step's rows (issued at step i-1, or just above for i==0).
    # TODO(synk): for very large tiles, aggregate these into one per-slot
    # semaphore wait to cut scalar-core bookkeeping.
    for t in range(tile):
        pltpu.make_async_copy(w_hbm_ref.at[0], row_buf.at[slot, t],
                              sems.at[slot, t]).wait()

    rows = row_buf[slot]                               # (tile, D), native dtype
    scale = scale_ref[0].astype(rows.dtype)            # bf16 math on bf16 tables
    out_ref[...] = (jnp.clip(rows, -limit, limit) * scale).astype(out_ref.dtype)


# ---------------------------------------------------------------------------
# Wrapper
# ---------------------------------------------------------------------------
def scaled_embedding_forward(indices, weight, scale_param, *, tile=None,
                             vmem_table_budget_bytes=16 * _MIB,
                             force_hbm_gather=False):
    """out[..., :] = clamp(weight, -LIMIT, LIMIT)[indices] * exp(clamp(scale, -10, 2))."""
    num_embeddings, embedding_dim = weight.shape
    w_dtype = weight.dtype
    itemsize = jnp.dtype(w_dtype).itemsize

    flat_ids = indices.reshape(-1).astype(jnp.int32)
    n = flat_ids.shape[0]

    # Scalar work (clamp + exp of a 0-d parameter) stays in the wrapper.
    # TODO(synk): PyTorch clamps weight.data / scale.data *in place*; a
    # functional JAX kernel cannot mutate parameters, so only the forward
    # value is reproduced (the clamp is fused into the gather instead).
    scale = jnp.exp(jnp.clip(scale_param.astype(jnp.float32), -10.0, 2.0))
    scale = scale.reshape((1,))

    table_bytes = num_embeddings * embedding_dim * itemsize
    use_vmem_table = (not force_hbm_gather) and (
        table_bytes <= vmem_table_budget_bytes)

    sub = _sublane_multiple(w_dtype)
    if tile is None:
        tile = 256 if use_vmem_table else 128          # review: 128-512 rows/step
    tile = max(sub, min(int(tile), _round_up(n, sub)))  # don't overshoot tiny inputs
    tile = _round_up(tile, sub)

    n_pad = _round_up(n, tile)
    if n_pad != n:
        flat_ids = jnp.concatenate(
            [flat_ids, jnp.zeros((n_pad - n,), jnp.int32)])
    grid = (n_pad // tile,)

    if use_vmem_table:
        ids2d = flat_ids.reshape(n_pad, 1)
        out_block_bytes = tile * embedding_dim * itemsize
        vmem_limit = (2 * table_bytes                       # table (+pipeline slack)
                      + 2 * out_block_bytes                 # out double-buffer
                      + tile * num_embeddings * itemsize    # one-hot intermediate
                      + tile * embedding_dim * 4            # f32 accumulator
                      + 4 * _MIB)                           # headroom
        vmem_limit = int(min(max(vmem_limit, 16 * _MIB), 100 * _MIB))

        out = pl.pallas_call(
            functools.partial(_vmem_table_kernel, limit=LIMIT),
            out_shape=jax.ShapeDtypeStruct((n_pad, embedding_dim), w_dtype),
            grid=grid,
            in_specs=[
                pl.BlockSpec((tile, 1), lambda i: (i, 0)),                 # ids
                pl.BlockSpec(memory_space=pltpu.SMEM),                     # scale
                pl.BlockSpec((num_embeddings, embedding_dim),
                             lambda i: (0, 0)),                            # table, fetched once
            ],
            out_specs=pl.BlockSpec((tile, embedding_dim), lambda i: (i, 0)),
            compiler_params=pltpu.CompilerParams(
                dimension_semantics=("parallel",),       # both v7x TCs share tokens
                vmem_limit_bytes=vmem_limit),
        )(ids2d, scale, weight)
    else:
        # TODO(synk): out-of-range indices become raw HBM DMAs here (no
        # PyTorch-style index error); the one-hot path above zeroes them.
        vmem_limit = (2 * tile * embedding_dim * itemsize     # (2, tile, D) row_buf
                      + 2 * tile * embedding_dim * itemsize   # out double-buffer
                      + 4 * _MIB)
        vmem_limit = int(min(max(vmem_limit, 16 * _MIB), 100 * _MIB))

        out = pl.pallas_call(
            functools.partial(_hbm_gather_kernel, tile=tile, limit=LIMIT),
            out_shape=jax.ShapeDtypeStruct((n_pad, embedding_dim), w_dtype),
            grid_spec=pltpu.PrefetchScalarGridSpec(
                num_scalar_prefetch=1,                        # flat_ids -> SMEM
                grid=grid,
                in_specs=[
                    pl.BlockSpec(memory_space=pltpu.SMEM),    # scale
                    pl.BlockSpec(memory_space=pl.ANY),        # weight stays in HBM
                ],
                out_specs=pl.BlockSpec((tile, embedding_dim),
                                       lambda i, ids: (i, 0)),
                scratch_shapes=[
                    pltpu.VMEM((2, tile, embedding_dim), w_dtype),
                    pltpu.SemaphoreType.DMA((2, tile)),
                ]),
            compiler_params=pltpu.CompilerParams(
                # Cross-step double buffering carries DMA state between grid
                # steps, so this axis must stay sequential.
                dimension_semantics=("arbitrary",),
                vmem_limit_bytes=vmem_limit),
        )(flat_ids, scale, weight)

    if n_pad != n:
        out = out[:n]
    return out.reshape(indices.shape + (embedding_dim,))


class ScaledEmbeddingPallas:
    """JAX/Pallas port of ScaledEmbedding (forward pass)."""

    def __init__(self, num_embeddings, embedding_dim, padding_idx=None,
                 initial_speed=1.0, key=None, dtype=jnp.float32):
        self.num_embeddings = num_embeddings
        self.embedding_dim = embedding_dim
        if padding_idx is not None and padding_idx < 0:
            padding_idx = num_embeddings + padding_idx
        self.padding_idx = padding_idx

        std = 0.1 / initial_speed
        if key is None:
            key = jax.random.PRNGKey(0)
        w = std * jax.random.normal(key, (num_embeddings, embedding_dim), dtype)
        if padding_idx is not None:
            w = w.at[padding_idx].set(0.0)
        self.weight = w
        self.scale = jnp.log(jnp.asarray(1.0 / std, dtype=jnp.float32))

    def __call__(self, indices):
        # TODO(synk): scale_grad_by_freq / sparse / padding_idx gradient
        # masking are backward-only features with no forward effect.
        return scaled_embedding_forward(indices, self.weight, self.scale)


if __name__ == "__main__":
    key = jax.random.PRNGKey(0)
    k_w, k_idx = jax.random.split(key)

    batch, seq = 2, 8
    num_embeddings, embedding_dim = 16, 32

    emb = ScaledEmbeddingPallas(num_embeddings, embedding_dim,
                                padding_idx=0, key=k_w)
    # Inflate some weights beyond LIMIT so the clamp path is exercised;
    # keep the padding row at zero (as reset_parameters does).
    emb.weight = emb.weight * 15.0
    emb.weight = emb.weight.at[0].set(0.0)
    # emb.scale = log(1/0.1) = 2.303 > 2, so the scale clamp is exercised too.

    indices = jax.random.randint(k_idx, (batch, seq), 0, num_embeddings,
                                 dtype=jnp.int32)

    # Plain-JAX reference of the forward semantics.
    w_cl = jnp.clip(emb.weight, -LIMIT, LIMIT)
    s = jnp.exp(jnp.clip(emb.scale, -10.0, 2.0))
    ref = w_cl[indices] * s

    # Path 1: VMEM-resident table + one-hot MXU gather (auto-selected here).
    y_fast = jax.block_until_ready(emb(indices))
    assert y_fast.shape == (batch, seq, embedding_dim)
    assert y_fast.dtype == emb.weight.dtype
    assert jnp.allclose(y_fast, ref, atol=1e-5, rtol=1e-5), "fast path mismatch"

    # Path 2: HBM-resident table + double-buffered per-row DMA gather
    # (the large-vocabulary fallback), forced here to exercise it.
    y_hbm = jax.block_until_ready(
        scaled_embedding_forward(indices, emb.weight, emb.scale,
                                 force_hbm_gather=True))
    assert y_hbm.shape == (batch, seq, embedding_dim)
    assert jnp.allclose(y_hbm, ref, atol=1e-5, rtol=1e-5), "hbm path mismatch"

    print("KERNEL_OK")
</pallas_src>

<mosaic_0001>
module attributes {stable_mosaic.version = 11 : i64} {
  func.func @_vmem_table_kernel(%arg0: i32, %arg1: memref<16x1xi32, #tpu.memory_space<vmem>>, %arg2: memref<1xf32, #tpu.memory_space<smem>>, %arg3: memref<16x32xf32, #tpu.memory_space<vmem>>, %arg4: memref<16x32xf32, #tpu.memory_space<vmem>>) attributes {dimension_semantics = [#tpu.dimension_semantics<parallel>], iteration_bounds = array<i64: 1>, scalar_prefetch = 0 : i64, scratch_operands = 0 : i64, tpu.core_type = #tpu.core_type<tc>, window_params = [{transform_indices = @transform_0, window_bounds = array<i64: 16, 1>}, {transform_indices = @transform_1, window_bounds = array<i64: 1>}, {pipeline_mode = #tpu.pipeline_mode<synchronous>, transform_indices = @transform_2, window_bounds = array<i64: 16, 32>}, {transform_indices = @transform_3, window_bounds = array<i64: 16, 32>}]} {
    %0 = tpu.iota {dimensions = array<i32: 1>} : vector<16x16xi32>
    %c0 = arith.constant 0 : index
    %c0_0 = arith.constant 0 : index
    %1 = vector.load %arg1[%c0, %c0_0] : memref<16x1xi32, #tpu.memory_space<vmem>>, vector<16x1xi32>
    %2 = vector.broadcast %1 : vector<16x1xi32> to vector<16x16xi32>
    %3 = arith.cmpi eq, %2, %0 : vector<16x16xi32>
    %4 = arith.extui %3 : vector<16x16xi1> to vector<16x16xi32>
    %5 = arith.sitofp %4 : vector<16x16xi32> to vector<16x16xf32>
    %c0_1 = arith.constant 0 : index
    %c0_2 = arith.constant 0 : index
    %6 = vector.load %arg3[%c0_1, %c0_2] : memref<16x32xf32, #tpu.memory_space<vmem>>, vector<16x32xf32>
    %cst = arith.constant dense<0.000000e+00> : vector<16x32xf32>
    %7 = tpu.matmul %5, %6, %cst {dimension_numbers = #tpu.dot_dimension_numbers<[1], [0], [0], [1], [0, 0, 1, 1], [], []>} : vector<16x16xf32>, vector<16x32xf32>, vector<16x32xf32> -> vector<16x32xf32>
    %cst_3 = arith.constant -1.000000e+00 : f32
    %cst_4 = arith.constant 1.000000e+00 : f32
    %8 = vector.broadcast %cst_3 : f32 to vector<16x32xf32>
    %9 = arith.maximumf %8, %7 : vector<16x32xf32>
    %10 = vector.broadcast %cst_4 : f32 to vector<16x32xf32>
    %11 = arith.minimumf %10, %9 : vector<16x32xf32>
    %c0_5 = arith.constant 0 : index
    %12 = memref.load %arg2[%c0_5] : memref<1xf32, #tpu.memory_space<smem>>
    %13 = vector.broadcast %12 : f32 to vector<16x32xf32>
    %14 = arith.mulf %11, %13 : vector<16x32xf32>
    %c0_6 = arith.constant 0 : index
    %c0_7 = arith.constant 0 : index
    %15 = vector.load %arg4[%c0_6, %c0_7] : memref<16x32xf32, #tpu.memory_space<vmem>>, vector<16x32xf32>
    tpu.vector_store %arg4[%c0_6, %c0_7], %14 {strides = array<i32>} : memref<16x32xf32, #tpu.memory_space<vmem>>, vector<16x32xf32>,
    return
  }
  func.func @transform_0(%arg0: i32) -> (i32, i32) {
    %c0_i32 = arith.constant 0 : i32
    %c0_i32_0 = arith.constant 0 : i32
    return %arg0, %c0_i32 : i32, i32
  }
  func.func @transform_1(%arg0: i32) -> i32 {
    %c0_i32 = arith.constant 0 : i32
    %c0_i32_0 = arith.constant 0 : i32
    return %c0_i32 : i32
  }
  func.func @transform_2(%arg0: i32) -> (i32, i32) {
    %c0_i32 = arith.constant 0 : i32
    %c0_i32_0 = arith.constant 0 : i32
    %c0_i32_1 = arith.constant 0 : i32
    return %c0_i32, %c0_i32_0 : i32, i32
  }
  func.func @transform_3(%arg0: i32) -> (i32, i32) {
    %c0_i32 = arith.constant 0 : i32
    %c0_i32_0 = arith.constant 0 : i32
    return %arg0, %c0_i32 : i32, i32
  }
}

</mosaic_0001>

<llo_original>
// kernel: tpu_custom_call.1
$region0: #{tpu_custom_call.1}
  #allocation0 [shape = 'u32[]', space=smem, size = 0x4, offset = 0x4, fixed_abs, tag = 'smem constant byte address 0x4 - core index']
  #allocation1 [shape = 'u32[72,128]{1,0:T(1,128)}', space=vmem, size = 0x9000, scoped, tag = 'internal scratch']
  #allocation2 [shape = 'f32[1]{0:T(128)S(6)}', space=smem, size = 0x200, scoped, tag = 'scoped memory for tpu_custom_call.1']
  %s0 = inlined_call_operand.vmem [shape: s32[16,1], index: 0, kind: input, shape index: {}]
  %s1 = inlined_call_operand.<no memory space> [shape: f32[1], index: 1, kind: input, shape index: {}]
  %s2 = inlined_call_operand.vmem [shape: f32[16,32], index: 2, kind: input, shape index: {}]
  %s3 = inlined_call_operand.hbm [shape: f32[16,32], index: 3, kind: output, shape index: {}]
  %s4 = sld [smem:[#allocation0]]
  $region22: #{tpu_custom_call.1} parent=0
    _
  %s6 = ssub.s32 1, %s4
  %s7 = scalar_select 0, %s6, %s4
  %8 = sst [smem:[#allocation2]] %s1
  $region1: #{tpu_custom_call.1} parent=0
    #allocation3 [shape = 'u8[8192]{0}', space=vmem, size = 0x2000, scoped, tag = 'output window, operand 0, single buffered']
    #allocation4 [shape = 's32[1]{0}', space=sflag, size = 0x4, scoped, tag = 'scoped memory for tpu_custom_call.1']
    %9 = vsyncpa [#allocation4], 0
    // Predicated region
    $region2: #{tpu_custom_call.1} parent=1 // pred_check
      _
    $region3: #{tpu_custom_call.1} parent=1 // pred_check_branch
      %11 = sbr.rel (0) target = $region5
    $region4: #{tpu_custom_call.1} parent=1 // pred_region
      _
    $region5: #{tpu_custom_call.1} parent=1 // pred_fallthru
      _
    // Predicated region
    $region6: #{tpu_custom_call.1} parent=1 // pred_check
      _
    $region7: #{tpu_custom_call.1} parent=1 // pred_check_branch
      %13 = sbr.rel (0) target = $region9
    $region8: #{tpu_custom_call.1} parent=1 // pred_region
      _
    $region9: #{tpu_custom_call.1} parent=1 // pred_fallthru
      _
    // Predicated region
    $region10: #{tpu_custom_call.1} parent=1 // pred_check
      _
    $region11: #{tpu_custom_call.1} parent=1 // pred_check_branch
      %15 = sbr.rel (0) target = $region13
    $region12: #{tpu_custom_call.1} parent=1 // pred_region
      _
    $region13: #{tpu_custom_call.1} parent=1 // pred_fallthru
      _
    %v16 = vlaneseq
    %v17 = vand.u32 %v16, 127
    %v18 = vld [vmem:[%s0] sm:$0xff]
    %v19 = vld [vmem:[%s0 + $0x8] sm:$0xff]
    %20 = vset.pattern.permute.xlu0 0
    %21 = vperm.xlu0 %20, %v18
    %v22 = vpop.permute.xlu0 %21
    %23 = vset.pattern.permute.xlu0 0
    %24 = vperm.xlu0 %23, %v19
    %v25 = vpop.permute.xlu0 %24
    %vm26 = vcmp.eq.s32.totalorder %v22, %v17
    %vm27 = vcmp.eq.s32.totalorder %v25, %v17
    %v28 = vsel %vm26, 1, 0
    %v29 = vsel %vm27, 1, 0
    %v30 = vcvt.s32.f32 %v28
    %v31 = vcvt.s32.f32 %v29
    %v32 = vld [vmem:[%s2] sm:$0xff]
    %v33 = vld [vmem:[%s2 + $0x8] sm:$0xff]
    %vm34 = vcmask 130048
    %v36 = vsel %vm34, %v30, 0
    %v39 = vsel %vm34, %v31, 0
    %41 = vmatpush.msra.mxu0 0.0
    %42 = vmatpush.msra.mxu0 0.0
    %43 = vmatpush.msra.mxu0 0.0
    %44 = vmatpush.msra.mxu0 0.0
    %45 = vmatpush.msra.mxu0 0.0
    %46 = vmatpush.msra.mxu0 0.0
    %47 = vmatpush.msra.mxu0 0.0
    %48 = vmatpush.msra.mxu0 0.0
    %49 = vmatpush.msra.mxu0 0.0
    %50 = vmatpush.msra.mxu0 0.0
    %51 = vmatpush.msra.mxu0 0.0
    %52 = vmatpush.msra.mxu0 0.0
    %53 = vmatpush.msra.mxu0 0.0
    %54 = vmatpush.msra.mxu0 0.0
    %55 = vmatpush.msra.mxu0 %v33
    %56 = vmatpush.msra.mxu0 %v32
    %57 = vmatmul.f32.gmra.mxu0 %v36
    %v58 = vpop.f32.mrf.mxu0
    %v59 = vadd.f32 0.0, %v58
    %60 = vmatmul.f32.gmra.mxu0 %v39
    %v61 = vpop.f32.mrf.mxu0
    %v62 = vadd.f32 0.0, %v61
    %63 = vdwg.mxu0
    %v64 = vmax.f32 %v59, -1.0
    %v65 = vmax.f32 %v62, -1.0
    %v66 = vmin.f32 %v64, 1.0
    %v67 = vmin.f32 %v65, 1.0
    %s68 = sld [smem:[#allocation2]]
    %v69 = vstv %s68
    %v70 = vmul.f32 %v66, %v69
    %v71 = vmul.f32 %v67, %v69
    %vm72 = vcmask 261120
    %73 = vst.msk [vmem:[#allocation3] sm:$0xff] %vm72, %v70
    %74 = vst.msk [vmem:[#allocation3 + $0x8] sm:$0xff] %vm72, %v71
    // Predicated region
    $region14: #{tpu_custom_call.1} parent=1 // pred_check
      _
    $region15: #{tpu_custom_call.1} parent=1 // pred_check_branch
      %76 = sbr.rel (0) target = $region17
    $region16: #{tpu_custom_call.1} parent=1 // pred_region
      %78 = vsyncadd [#allocation4], 0
      %s79 = sshll.u32 [#allocation3], 4
      %s80 = int_to_ptr.vmem [resolvable:$true] %s79
      %s81 = sshll.u32 %s3, 4
      %s82 = int_to_ptr.hbm [resolvable:$true] %s81
      %87 = dma.vmem_to_hbm [thread:$0]  %s80, 256, %s82, [#allocation4], 128, 128, 8
    $region17: #{tpu_custom_call.1} parent=1 // pred_fallthru
      _
    // Predicated region
    $region18: #{tpu_custom_call.1} parent=1 // pred_check
      _
    $region19: #{tpu_custom_call.1} parent=1 // pred_check_branch
      %89 = sbr.rel (0) target = $region21
    $region20: #{tpu_custom_call.1} parent=1 // pred_region
      %91 = dma.done [#allocation4], 256
    $region21: #{tpu_custom_call.1} parent=1 // pred_fallthru
      _
    %92 = vsyncpa [#allocation4], 1

</llo_original>
